<compile_context>
chip_gen: v5e
topology: v5e:2x2
jax: 0.10.0
libtpu: 0.0.40
codegen_flags: <defaults>
</compile_context>

<pallas_src>
import functools

import jax
import jax.numpy as jnp
from jax import lax
from jax.experimental import pallas as pl
from jax.experimental.pallas import tpu as pltpu

_INV_SQRT2 = 0.7071067811865475


def _fused_concat_conv_gelu_bn_kernel(num_skip, s_tiles, hw_valid, t_spatial,
                                      m_total, eps, *refs):
    """Two-phase fused kernel over grid = (phase, N, spatial_tiles).

    Grid is iterated row-major (last axis fastest), so all phase-0 steps run
    before any phase-1 step.
      phase 0: y = GELU(sum_k W_k @ skip_k_tile + b) -> resident VMEM slab;
               accumulate per-channel sum / sum-of-squares (padded spatial
               columns masked out); on the last step fold the BatchNorm batch
               statistics into per-channel (scale, shift).
      phase 1: out_tile = y_tile * scale + shift   (VMEM read, HBM write).
    """
    skip_refs = refs[:num_skip]
    w_refs = refs[num_skip:2 * num_skip]
    b_ref, gamma_ref, beta_ref = refs[2 * num_skip:2 * num_skip + 3]
    out_ref = refs[2 * num_skip + 3]
    y_scr, sum_scr, sq_scr, scale_scr, shift_scr = refs[2 * num_skip + 4:]

    phase = pl.program_id(0)
    n = pl.program_id(1)
    s = pl.program_id(2)
    idx = n * s_tiles + s

    @pl.when(phase == 0)
    def _phase0():
        @pl.when(jnp.logical_and(n == 0, s == 0))
        def _init():
            sum_scr[...] = jnp.zeros_like(sum_scr)
            sq_scr[...] = jnp.zeros_like(sq_scr)

        # fused concat + 1x1 conv: per-skip partial matmuls straight from each ref
        # (avoids sublane concat/relayout since each skip tile has only C sublanes)
        z = jnp.dot(w_refs[0][...], skip_refs[0][...],
                    preferred_element_type=jnp.float32)
        for k in range(1, num_skip):
            z = z + jnp.dot(w_refs[k][...], skip_refs[k][...],
                            preferred_element_type=jnp.float32)
        z = z + b_ref[...]                                   # [Cout, 1] broadcasts
        # exact (erf-based) GELU, matching torch.nn.GELU default.
        # (tanh-approx GELU would offload work to the EUP slot on v7x, but changes
        #  numerics vs. the PyTorch module, so we keep exact erf.)
        y = 0.5 * z * (1.0 + lax.erf(z * _INV_SQRT2))

        y_scr[idx] = y

        if hw_valid is not None:
            # spatial axis was zero-padded: exclude padded columns from BN stats
            col = s * t_spatial + lax.broadcasted_iota(jnp.int32, y.shape, 1)
            ym = jnp.where(col < hw_valid, y, 0.0)
        else:
            ym = y
        sum_scr[...] += jnp.sum(ym, axis=1, keepdims=True)
        sq_scr[...] += jnp.sum(ym * ym, axis=1, keepdims=True)

        @pl.when(jnp.logical_and(n == pl.num_programs(1) - 1,
                                 s == pl.num_programs(2) - 1))
        def _finalize_stats():
            mean = sum_scr[...] * (1.0 / m_total)
            # clamp: E[y^2] - mean^2 can go slightly negative from cancellation
            # TODO(synk): for very large N*H*W or |mean| >> std, replace with a
            # second (VMEM-resident) pass over y_scr using shifted sums.
            var = jnp.maximum(sq_scr[...] * (1.0 / m_total) - mean * mean, 0.0)
            inv = lax.rsqrt(var + eps)
            scale = gamma_ref[...] * inv
            scale_scr[...] = scale
            shift_scr[...] = beta_ref[...] - mean * scale

    @pl.when(phase == 1)
    def _phase1():
        out_ref[...] = y_scr[idx] * scale_scr[...] + shift_scr[...]


def _round_up(x, m):
    return ((x + m - 1) // m) * m


def _vmem_capacity_bytes():
    """Physical VMEM of the current TPU generation (conservative fallback)."""
    try:
        cap = getattr(pltpu.get_tpu_info(), "vmem_capacity_bytes", None)
        if cap:
            return int(cap)
    except Exception:
        pass
    return 64 * 1024 * 1024  # v7x per-TC size: the most restrictive generation


def _vmem_budgets():
    """(resident-slab budget, vmem_limit_bytes), generation-aware.

    v7x (64 MiB):   ~40 MiB slab, 48 MiB limit.
    v5e/v6e (128 MiB): ~96 MiB slab, 112 MiB limit (v5e's scoped default is only
    16 MiB, so the explicit limit is required there).
    """
    cap = _vmem_capacity_bytes()
    if cap >= 96 * 1024 * 1024:
        return cap - 32 * 1024 * 1024, cap - 16 * 1024 * 1024
    return (cap * 5) // 8, (cap * 3) // 4


def _pick_spatial_tile(hw, max_tile):
    """Largest lane-aligned spatial tile; spatial axis is padded up to a multiple
    of the returned tile, so any H*W is handled (no tiny-divisor fallback)."""
    max_tile = max(128, (max_tile // 128) * 128)
    t = min(_round_up(hw, 128), max_tile)
    hw_pad = _round_up(hw, t)
    return t, hw_pad


@functools.partial(jax.jit, static_argnames=("eps", "max_tile"))
def concat_forward(skip, w, b, gamma, beta, *, eps=1e-5, max_tile=16384):
    """Forward pass of `Concat`.

    skip        : tuple of [N, C, H, W] float32 arrays (NCHW)
    w           : [Cout, Cin] with Cin = C * len(skip) (Conv2d 1x1 weight, squeezed)
    b           : [Cout]
    gamma, beta : [Cout] BatchNorm2d affine parameters
    returns     : [N, Cout, H, W]  (training-mode BN with batch statistics)
    """
    num_skip = len(skip)
    N, C, H, W = skip[0].shape
    Cout, Cin = w.shape
    assert Cin == C * num_skip
    HW = H * W
    T, HW_pad = _pick_spatial_tile(HW, max_tile)
    assert HW_pad % T == 0
    s_tiles = HW_pad // T
    pad = HW_pad - HW
    m_total = float(N * HW)  # BN stats over valid elements only

    # NCHW is already channel-major: flatten spatial only, no transposes anywhere.
    skip_flat = [jnp.reshape(x, (N, C, HW)) for x in skip]
    if pad:
        skip_flat = [jnp.pad(x, ((0, 0), (0, 0), (0, pad))) for x in skip_flat]

    # Pre-split the 1x1-conv weight so the kernel does per-skip partial matmuls.
    w_slices = [w[:, k * C:(k + 1) * C] for k in range(num_skip)]

    # Generation-aware VMEM budget for the resident GELU slab (sublane-padded),
    # leaving headroom for double-buffered input/output tiles + compiler scratch.
    slab_budget, vmem_limit = _vmem_budgets()
    cout_pad = ((Cout + 7) // 8) * 8
    y_slab_bytes = N * s_tiles * cout_pad * T * 4
    assert y_slab_bytes <= slab_budget, "resident GELU slab too large for VMEM"
    # TODO(synk): for activations exceeding the VMEM budget, tile the BN-apply
    # phase as a second HBM pass instead of keeping y resident.
    # TODO(synk): pack two spatial tiles per 8-sublane row (Cout=4 leaves half the
    # sublanes empty) if the slab budget ever forces the HBM fallback.

    grid = (2, N, s_tiles)

    def skip_map(p, n, s):
        # phase 0: real tile; phase 1: stay pinned to the LAST phase-0 block so the
        # block index never changes at / after the phase boundary (no redundant
        # re-fetch of the inputs, no DMA-wait bubble).
        return ((1 - p) * n + p * (N - 1), 0, (1 - p) * s + p * (s_tiles - 1))

    def out_map(p, n, s):
        # phase 0: pinned to block (0,0,0), which the kernel never writes.
        # INVARIANT (do not break): (0,0,0) is exactly the first block phase 1
        # writes, so the block index does not change at the phase-0 -> phase-1
        # transition and the untouched phase-0 buffer is overwritten before any
        # writeback; otherwise garbage would be flushed to HBM.
        return (p * n, 0, p * s)

    def fixed_map(p, n, s):
        return (0, 0)

    kernel = functools.partial(
        _fused_concat_conv_gelu_bn_kernel,
        num_skip, s_tiles, (HW if pad else None), T, m_total, eps)

    out = pl.pallas_call(
        kernel,
        out_shape=jax.ShapeDtypeStruct((N, Cout, HW_pad), jnp.float32),
        grid=grid,
        in_specs=(
            [pl.BlockSpec((None, C, T), skip_map) for _ in range(num_skip)]
            + [pl.BlockSpec((Cout, C), fixed_map) for _ in range(num_skip)]  # W_k
            + [
                pl.BlockSpec((Cout, 1), fixed_map),     # conv bias
                pl.BlockSpec((Cout, 1), fixed_map),     # BN gamma
                pl.BlockSpec((Cout, 1), fixed_map),     # BN beta
            ]
        ),
        out_specs=pl.BlockSpec((None, Cout, T), out_map),
        scratch_shapes=[
            pltpu.VMEM((N * s_tiles, Cout, T), jnp.float32),  # resident GELU output
            pltpu.VMEM((Cout, 1), jnp.float32),               # per-channel sum
            pltpu.VMEM((Cout, 1), jnp.float32),               # per-channel sum of sq
            pltpu.VMEM((Cout, 1), jnp.float32),               # folded BN scale
            pltpu.VMEM((Cout, 1), jnp.float32),               # folded BN shift
        ],
        compiler_params=pltpu.CompilerParams(
            # Phase axis + stats accumulation carry cross-iteration dependencies
            # through VMEM scratch -> all axes must stay "arbitrary".
            # TODO(synk): v7x-only headroom: split the batch axis across the two
            # TensorCores via core_map with partial stats combined in VMEM_SHARED.
            dimension_semantics=("arbitrary", "arbitrary", "arbitrary"),
            vmem_limit_bytes=vmem_limit,
        ),
    )(*skip_flat, *w_slices,
      b.reshape(Cout, 1), gamma.reshape(Cout, 1), beta.reshape(Cout, 1))

    if pad:
        out = out[:, :, :HW]
    # already NCHW: just restore the spatial dims
    return out.reshape(N, Cout, H, W)


if __name__ == "__main__":
    # Module config: channels=4, num_skip=2  ->  Conv2d(8 -> 4, kernel_size=1)
    channels, num_skip = 4, 2
    N, H, W = 2, 16, 16
    Cin, Cout = channels * num_skip, channels

    key = jax.random.PRNGKey(0)
    k1, k2, k3, k4 = jax.random.split(key, 4)

    # skip: tuple of num_skip tensors, each [N, C, H, W]
    skip = (
        jax.random.normal(k1, (N, channels, H, W), dtype=jnp.float32),
        jax.random.normal(k2, (N, channels, H, W), dtype=jnp.float32),
    )

    # Conv2d weight [Cout, Cin, 1, 1] stored as [Cout, Cin]
    w = (jax.random.normal(k3, (Cout, Cin), dtype=jnp.float32)
         * (1.0 / jnp.sqrt(jnp.float32(Cin))))
    b = jax.random.normal(k4, (Cout,), dtype=jnp.float32) * 0.1
    # BatchNorm2d default init: weight=1, bias=0
    gamma = jnp.ones((Cout,), dtype=jnp.float32)
    beta = jnp.zeros((Cout,), dtype=jnp.float32)

    out = concat_forward(skip, w, b, gamma, beta)
    out = jax.block_until_ready(out)
    assert out.shape == (N, channels, H, W), out.shape

    # Pure-JAX reference: concat -> 1x1 conv -> exact GELU -> batch-stats BatchNorm.
    x = jnp.concatenate(skip, axis=1)
    z = jnp.einsum("oc,nchw->nohw", w, x,
                   precision=lax.Precision.HIGHEST) + b[None, :, None, None]
    y = 0.5 * z * (1.0 + lax.erf(z * _INV_SQRT2))
    mean = y.mean(axis=(0, 2, 3))
    var = y.var(axis=(0, 2, 3))
    ref = (gamma[None, :, None, None]
           * (y - mean[None, :, None, None])
           * lax.rsqrt(var + 1e-5)[None, :, None, None]
           + beta[None, :, None, None])
    assert jnp.allclose(out, ref, atol=5e-3, rtol=5e-3), \
        float(jnp.max(jnp.abs(out - ref)))

    print("KERNEL_OK")
</pallas_src>

<mosaic_0001>
module attributes {stable_mosaic.version = 11 : i64} {
  func.func @_fused_concat_conv_gelu_bn_kernel(%arg0: i32, %arg1: i32, %arg2: i32, %arg3: memref<1x4x256xf32, #tpu.memory_space<vmem>>, %arg4: memref<1x4x256xf32, #tpu.memory_space<vmem>>, %arg5: memref<4x4xf32, #tpu.memory_space<vmem>>, %arg6: memref<4x4xf32, #tpu.memory_space<vmem>>, %arg7: memref<4x1xf32, #tpu.memory_space<vmem>>, %arg8: memref<4x1xf32, #tpu.memory_space<vmem>>, %arg9: memref<4x1xf32, #tpu.memory_space<vmem>>, %arg10: memref<1x4x256xf32, #tpu.memory_space<vmem>>, %arg11: memref<2x4x256xf32, #tpu.memory_space<vmem>>, %arg12: memref<4x1xf32, #tpu.memory_space<vmem>>, %arg13: memref<4x1xf32, #tpu.memory_space<vmem>>, %arg14: memref<4x1xf32, #tpu.memory_space<vmem>>, %arg15: memref<4x1xf32, #tpu.memory_space<vmem>>) attributes {dimension_semantics = [#tpu.dimension_semantics<arbitrary>, #tpu.dimension_semantics<arbitrary>, #tpu.dimension_semantics<arbitrary>], iteration_bounds = array<i64: 2, 2, 1>, scalar_prefetch = 0 : i64, scratch_operands = 5 : i64, tpu.core_type = #tpu.core_type<tc>, window_params = [{transform_indices = @transform_0, window_bounds = array<i64: 1, 4, 256>}, {transform_indices = @transform_1, window_bounds = array<i64: 1, 4, 256>}, {pipeline_mode = #tpu.pipeline_mode<synchronous>, transform_indices = @transform_2, window_bounds = array<i64: 4, 4>}, {pipeline_mode = #tpu.pipeline_mode<synchronous>, transform_indices = @transform_3, window_bounds = array<i64: 4, 4>}, {pipeline_mode = #tpu.pipeline_mode<synchronous>, transform_indices = @transform_4, window_bounds = array<i64: 4, 1>}, {pipeline_mode = #tpu.pipeline_mode<synchronous>, transform_indices = @transform_5, window_bounds = array<i64: 4, 1>}, {pipeline_mode = #tpu.pipeline_mode<synchronous>, transform_indices = @transform_6, window_bounds = array<i64: 4, 1>}, {transform_indices = @transform_7, window_bounds = array<i64: 1, 4, 256>}]} {
    %c1_i32 = arith.constant 1 : i32
    %0 = arith.muli %arg1, %c1_i32 : i32
    %1 = arith.addi %0, %arg2 : i32
    %c0_i32 = arith.constant 0 : i32
    %2 = arith.cmpi eq, %arg0, %c0_i32 : i32
    %3 = arith.extui %2 : i1 to i32
    %c0_i32_0 = arith.constant 0 : i32
    %4 = arith.cmpi ne, %3, %c0_i32_0 : i32
    scf.if %4 {
      %c0_i32_3 = arith.constant 0 : i32
      %8 = arith.cmpi eq, %arg1, %c0_i32_3 : i32
      %c0_i32_4 = arith.constant 0 : i32
      %9 = arith.cmpi eq, %arg2, %c0_i32_4 : i32
      %10 = arith.andi %8, %9 : i1
      %11 = arith.extui %10 : i1 to i32
      %c0_i32_5 = arith.constant 0 : i32
      %12 = arith.cmpi ne, %11, %c0_i32_5 : i32
      scf.if %12 {
        %cst_36 = arith.constant 0.000000e+00 : f32
        %53 = vector.broadcast %cst_36 : f32 to vector<4x1xf32>
        %c0_37 = arith.constant 0 : index
        %c0_38 = arith.constant 0 : index
        %54 = vector.load %arg12[%c0_37, %c0_38] : memref<4x1xf32, #tpu.memory_space<vmem>>, vector<4x1xf32>
        tpu.vector_store %arg12[%c0_37, %c0_38], %53 {strides = array<i32>} : memref<4x1xf32, #tpu.memory_space<vmem>>, vector<4x1xf32>,
        %cst_39 = arith.constant 0.000000e+00 : f32
        %55 = vector.broadcast %cst_39 : f32 to vector<4x1xf32>
        %c0_40 = arith.constant 0 : index
        %c0_41 = arith.constant 0 : index
        %56 = vector.load %arg13[%c0_40, %c0_41] : memref<4x1xf32, #tpu.memory_space<vmem>>, vector<4x1xf32>
        tpu.vector_store %arg13[%c0_40, %c0_41], %55 {strides = array<i32>} : memref<4x1xf32, #tpu.memory_space<vmem>>, vector<4x1xf32>,
      } else {
      }
      %c0 = arith.constant 0 : index
      %c0_6 = arith.constant 0 : index
      %13 = vector.load %arg5[%c0, %c0_6] : memref<4x4xf32, #tpu.memory_space<vmem>>, vector<4x4xf32>
      %c0_7 = arith.constant 0 : index
      %c0_8 = arith.constant 0 : index
      %c0_9 = arith.constant 0 : index
      %14 = vector.load %arg3[%c0_7, %c0_8, %c0_9] : memref<1x4x256xf32, #tpu.memory_space<vmem>>, vector<1x4x256xf32>
      %15 = vector.shape_cast %14 : vector<1x4x256xf32> to vector<4x256xf32>
      %cst = arith.constant dense<0.000000e+00> : vector<4x256xf32>
      %16 = tpu.matmul %13, %15, %cst {dimension_numbers = #tpu.dot_dimension_numbers<[1], [0], [0], [1], [0, 0, 1, 1], [], []>} : vector<4x4xf32>, vector<4x256xf32>, vector<4x256xf32> -> vector<4x256xf32>
      %c0_10 = arith.constant 0 : index
      %c0_11 = arith.constant 0 : index
      %17 = vector.load %arg6[%c0_10, %c0_11] : memref<4x4xf32, #tpu.memory_space<vmem>>, vector<4x4xf32>
      %c0_12 = arith.constant 0 : index
      %c0_13 = arith.constant 0 : index
      %c0_14 = arith.constant 0 : index
      %18 = vector.load %arg4[%c0_12, %c0_13, %c0_14] : memref<1x4x256xf32, #tpu.memory_space<vmem>>, vector<1x4x256xf32>
      %19 = vector.shape_cast %18 : vector<1x4x256xf32> to vector<4x256xf32>
      %cst_15 = arith.constant dense<0.000000e+00> : vector<4x256xf32>
      %20 = tpu.matmul %17, %19, %cst_15 {dimension_numbers = #tpu.dot_dimension_numbers<[1], [0], [0], [1], [0, 0, 1, 1], [], []>} : vector<4x4xf32>, vector<4x256xf32>, vector<4x256xf32> -> vector<4x256xf32>
      %21 = arith.addf %16, %20 : vector<4x256xf32>
      %c0_16 = arith.constant 0 : index
      %c0_17 = arith.constant 0 : index
      %22 = vector.load %arg7[%c0_16, %c0_17] : memref<4x1xf32, #tpu.memory_space<vmem>>, vector<4x1xf32>
      %23 = vector.broadcast %22 : vector<4x1xf32> to vector<4x256xf32>
      %24 = arith.addf %21, %23 : vector<4x256xf32>
      %cst_18 = arith.constant 5.000000e-01 : f32
      %25 = vector.broadcast %cst_18 : f32 to vector<4x256xf32>
      %26 = arith.mulf %25, %24 : vector<4x256xf32>
      %cst_19 = arith.constant 0.707106769 : f32
      %27 = vector.broadcast %cst_19 : f32 to vector<4x256xf32>
      %28 = arith.mulf %24, %27 : vector<4x256xf32>
      %29 = math.erf %28 : vector<4x256xf32>
      %cst_20 = arith.constant 1.000000e+00 : f32
      %30 = vector.broadcast %cst_20 : f32 to vector<4x256xf32>
      %31 = arith.addf %30, %29 : vector<4x256xf32>
      %32 = arith.mulf %26, %31 : vector<4x256xf32>
      %33 = arith.index_cast %1 : i32 to index
      %c0_21 = arith.constant 0 : index
      %c0_22 = arith.constant 0 : index
      %34 = vector.load %arg11[%33, %c0_21, %c0_22] : memref<2x4x256xf32, #tpu.memory_space<vmem>>, vector<1x4x256xf32>
      %35 = vector.shape_cast %34 : vector<1x4x256xf32> to vector<4x256xf32>
      %36 = vector.shape_cast %32 : vector<4x256xf32> to vector<1x4x256xf32>
      tpu.vector_store %arg11[%33, %c0_21, %c0_22], %36 {strides = array<i32>} : memref<2x4x256xf32, #tpu.memory_space<vmem>>, vector<1x4x256xf32>,
      %c0_23 = arith.constant 0 : index
      %c0_24 = arith.constant 0 : index
      %37 = vector.load %arg12[%c0_23, %c0_24] : memref<4x1xf32, #tpu.memory_space<vmem>>, vector<4x1xf32>
      %cst_25 = arith.constant dense<0.000000e+00> : vector<4xf32>
      %38 = vector.multi_reduction <add>, %32, %cst_25 [1] : vector<4x256xf32> to vector<4xf32>
      %39 = vector.shape_cast %38 : vector<4xf32> to vector<4x1xf32>
      %40 = arith.addf %37, %39 : vector<4x1xf32>
      %c0_26 = arith.constant 0 : index
      %c0_27 = arith.constant 0 : index
      %41 = vector.load %arg12[%c0_26, %c0_27] : memref<4x1xf32, #tpu.memory_space<vmem>>, vector<4x1xf32>
      tpu.vector_store %arg12[%c0_26, %c0_27], %40 {strides = array<i32>} : memref<4x1xf32, #tpu.memory_space<vmem>>, vector<4x1xf32>,
      %c0_28 = arith.constant 0 : index
      %c0_29 = arith.constant 0 : index
      %42 = vector.load %arg13[%c0_28, %c0_29] : memref<4x1xf32, #tpu.memory_space<vmem>>, vector<4x1xf32>
      %43 = arith.mulf %32, %32 : vector<4x256xf32>
      %cst_30 = arith.constant dense<0.000000e+00> : vector<4xf32>
      %44 = vector.multi_reduction <add>, %43, %cst_30 [1] : vector<4x256xf32> to vector<4xf32>
      %45 = vector.shape_cast %44 : vector<4xf32> to vector<4x1xf32>
      %46 = arith.addf %42, %45 : vector<4x1xf32>
      %c0_31 = arith.constant 0 : index
      %c0_32 = arith.constant 0 : index
      %47 = vector.load %arg13[%c0_31, %c0_32] : memref<4x1xf32, #tpu.memory_space<vmem>>, vector<4x1xf32>
      tpu.vector_store %arg13[%c0_31, %c0_32], %46 {strides = array<i32>} : memref<4x1xf32, #tpu.memory_space<vmem>>, vector<4x1xf32>,
      %c1_i32_33 = arith.constant 1 : i32
      %48 = arith.cmpi eq, %arg1, %c1_i32_33 : i32
      %c0_i32_34 = arith.constant 0 : i32
      %49 = arith.cmpi eq, %arg2, %c0_i32_34 : i32
      %50 = arith.andi %48, %49 : i1
      %51 = arith.extui %50 : i1 to i32
      %c0_i32_35 = arith.constant 0 : i32
      %52 = arith.cmpi ne, %51, %c0_i32_35 : i32
      scf.if %52 {
        %c0_36 = arith.constant 0 : index
        %c0_37 = arith.constant 0 : index
        %53 = vector.load %arg12[%c0_36, %c0_37] : memref<4x1xf32, #tpu.memory_space<vmem>>, vector<4x1xf32>
        %cst_38 = arith.constant 0.001953125 : f32
        %54 = vector.broadcast %cst_38 : f32 to vector<4x1xf32>
        %55 = arith.mulf %53, %54 : vector<4x1xf32>
        %c0_39 = arith.constant 0 : index
        %c0_40 = arith.constant 0 : index
        %56 = vector.load %arg13[%c0_39, %c0_40] : memref<4x1xf32, #tpu.memory_space<vmem>>, vector<4x1xf32>
        %cst_41 = arith.constant 0.001953125 : f32
        %57 = vector.broadcast %cst_41 : f32 to vector<4x1xf32>
        %58 = arith.mulf %56, %57 : vector<4x1xf32>
        %59 = arith.mulf %55, %55 : vector<4x1xf32>
        %60 = arith.subf %58, %59 : vector<4x1xf32>
        %cst_42 = arith.constant 0.000000e+00 : f32
        %61 = vector.broadcast %cst_42 : f32 to vector<4x1xf32>
        %62 = arith.maximumf %60, %61 : vector<4x1xf32>
        %cst_43 = arith.constant 9.99999974E-6 : f32
        %63 = vector.broadcast %cst_43 : f32 to vector<4x1xf32>
        %64 = arith.addf %62, %63 : vector<4x1xf32>
        %65 = math.rsqrt %64 : vector<4x1xf32>
        %c0_44 = arith.constant 0 : index
        %c0_45 = arith.constant 0 : index
        %66 = vector.load %arg8[%c0_44, %c0_45] : memref<4x1xf32, #tpu.memory_space<vmem>>, vector<4x1xf32>
        %67 = arith.mulf %66, %65 : vector<4x1xf32>
        %c0_46 = arith.constant 0 : index
        %c0_47 = arith.constant 0 : index
        %68 = vector.load %arg14[%c0_46, %c0_47] : memref<4x1xf32, #tpu.memory_space<vmem>>, vector<4x1xf32>
        tpu.vector_store %arg14[%c0_46, %c0_47], %67 {strides = array<i32>} : memref<4x1xf32, #tpu.memory_space<vmem>>, vector<4x1xf32>,
        %c0_48 = arith.constant 0 : index
        %c0_49 = arith.constant 0 : index
        %69 = vector.load %arg9[%c0_48, %c0_49] : memref<4x1xf32, #tpu.memory_space<vmem>>, vector<4x1xf32>
        %70 = arith.mulf %55, %67 : vector<4x1xf32>
        %71 = arith.subf %69, %70 : vector<4x1xf32>
        %c0_50 = arith.constant 0 : index
        %c0_51 = arith.constant 0 : index
        %72 = vector.load %arg15[%c0_50, %c0_51] : memref<4x1xf32, #tpu.memory_space<vmem>>, vector<4x1xf32>
        tpu.vector_store %arg15[%c0_50, %c0_51], %71 {strides = array<i32>} : memref<4x1xf32, #tpu.memory_space<vmem>>, vector<4x1xf32>,
      } else {
      }
    } else {
    }
    %c1_i32_1 = arith.constant 1 : i32
    %5 = arith.cmpi eq, %arg0, %c1_i32_1 : i32
    %6 = arith.extui %5 : i1 to i32
    %c0_i32_2 = arith.constant 0 : i32
    %7 = arith.cmpi ne, %6, %c0_i32_2 : i32
    scf.if %7 {
      %8 = arith.index_cast %1 : i32 to index
      %c0 = arith.constant 0 : index
      %c0_3 = arith.constant 0 : index
      %9 = vector.load %arg11[%8, %c0, %c0_3] : memref<2x4x256xf32, #tpu.memory_space<vmem>>, vector<1x4x256xf32>
      %10 = vector.shape_cast %9 : vector<1x4x256xf32> to vector<4x256xf32>
      %c0_4 = arith.constant 0 : index
      %c0_5 = arith.constant 0 : index
      %11 = vector.load %arg14[%c0_4, %c0_5] : memref<4x1xf32, #tpu.memory_space<vmem>>, vector<4x1xf32>
      %12 = vector.broadcast %11 : vector<4x1xf32> to vector<4x256xf32>
      %13 = arith.mulf %10, %12 : vector<4x256xf32>
      %c0_6 = arith.constant 0 : index
      %c0_7 = arith.constant 0 : index
      %14 = vector.load %arg15[%c0_6, %c0_7] : memref<4x1xf32, #tpu.memory_space<vmem>>, vector<4x1xf32>
      %15 = vector.broadcast %14 : vector<4x1xf32> to vector<4x256xf32>
      %16 = arith.addf %13, %15 : vector<4x256xf32>
      %c0_8 = arith.constant 0 : index
      %c0_9 = arith.constant 0 : index
      %c0_10 = arith.constant 0 : index
      %17 = vector.load %arg10[%c0_8, %c0_9, %c0_10] : memref<1x4x256xf32, #tpu.memory_space<vmem>>, vector<1x4x256xf32>
      %18 = vector.shape_cast %17 : vector<1x4x256xf32> to vector<4x256xf32>
      %19 = vector.shape_cast %16 : vector<4x256xf32> to vector<1x4x256xf32>
      tpu.vector_store %arg10[%c0_8, %c0_9, %c0_10], %19 {strides = array<i32>} : memref<1x4x256xf32, #tpu.memory_space<vmem>>, vector<1x4x256xf32>,
    } else {
    }
    return
  }
  func.func @transform_0(%arg0: i32, %arg1: i32, %arg2: i32) -> (i32, i32, i32) {
    %c1_i32 = arith.constant 1 : i32
    %0 = arith.subi %c1_i32, %arg0 : i32
    %1 = arith.muli %0, %arg1 : i32
    %c1_i32_0 = arith.constant 1 : i32
    %2 = arith.muli %arg0, %c1_i32_0 : i32
    %3 = arith.addi %1, %2 : i32
    %c1_i32_1 = arith.constant 1 : i32
    %4 = arith.subi %c1_i32_1, %arg0 : i32
    %5 = arith.muli %4, %arg2 : i32
    %c0_i32 = arith.constant 0 : i32
    %6 = arith.muli %arg0, %c0_i32 : i32
    %7 = arith.addi %5, %6 : i32
    %c0_i32_2 = arith.constant 0 : i32
    %c0_i32_3 = arith.constant 0 : i32
    return %3, %c0_i32_2, %7 : i32, i32, i32
  }
  func.func @transform_1(%arg0: i32, %arg1: i32, %arg2: i32) -> (i32, i32, i32) {
    %c1_i32 = arith.constant 1 : i32
    %0 = arith.subi %c1_i32, %arg0 : i32
    %1 = arith.muli %0, %arg1 : i32
    %c1_i32_0 = arith.constant 1 : i32
    %2 = arith.muli %arg0, %c1_i32_0 : i32
    %3 = arith.addi %1, %2 : i32
    %c1_i32_1 = arith.constant 1 : i32
    %4 = arith.subi %c1_i32_1, %arg0 : i32
    %5 = arith.muli %4, %arg2 : i32
    %c0_i32 = arith.constant 0 : i32
    %6 = arith.muli %arg0, %c0_i32 : i32
    %7 = arith.addi %5, %6 : i32
    %c0_i32_2 = arith.constant 0 : i32
    %c0_i32_3 = arith.constant 0 : i32
    return %3, %c0_i32_2, %7 : i32, i32, i32
  }
  func.func @transform_2(%arg0: i32, %arg1: i32, %arg2: i32) -> (i32, i32) {
    %c0_i32 = arith.constant 0 : i32
    %c0_i32_0 = arith.constant 0 : i32
    %c0_i32_1 = arith.constant 0 : i32
    return %c0_i32, %c0_i32_0 : i32, i32
  }
  func.func @transform_3(%arg0: i32, %arg1: i32, %arg2: i32) -> (i32, i32) {
    %c0_i32 = arith.constant 0 : i32
    %c0_i32_0 = arith.constant 0 : i32
    %c0_i32_1 = arith.constant 0 : i32
    return %c0_i32, %c0_i32_0 : i32, i32
  }
  func.func @transform_4(%arg0: i32, %arg1: i32, %arg2: i32) -> (i32, i32) {
    %c0_i32 = arith.constant 0 : i32
    %c0_i32_0 = arith.constant 0 : i32
    %c0_i32_1 = arith.constant 0 : i32
    return %c0_i32, %c0_i32_0 : i32, i32
  }
  func.func @transform_5(%arg0: i32, %arg1: i32, %arg2: i32) -> (i32, i32) {
    %c0_i32 = arith.constant 0 : i32
    %c0_i32_0 = arith.constant 0 : i32
    %c0_i32_1 = arith.constant 0 : i32
    return %c0_i32, %c0_i32_0 : i32, i32
  }
  func.func @transform_6(%arg0: i32, %arg1: i32, %arg2: i32) -> (i32, i32) {
    %c0_i32 = arith.constant 0 : i32
    %c0_i32_0 = arith.constant 0 : i32
    %c0_i32_1 = arith.constant 0 : i32
    return %c0_i32, %c0_i32_0 : i32, i32
  }
  func.func @transform_7(%arg0: i32, %arg1: i32, %arg2: i32) -> (i32, i32, i32) {
    %0 = arith.muli %arg0, %arg1 : i32
    %1 = arith.muli %arg0, %arg2 : i32
    %c0_i32 = arith.constant 0 : i32
    %c0_i32_0 = arith.constant 0 : i32
    return %0, %c0_i32, %1 : i32, i32, i32
  }
}

</mosaic_0001>

<llo_original>
// kernel: concat_forward.1
$region0: #{concat_forward.1}
  #allocation0 [shape = 'u32[]', space=smem, size = 0x4, offset = 0x4, fixed_abs, tag = 'smem constant byte address 0x4 - core index']
  #allocation1 [shape = 'u32[72,128]{1,0:T(1,128)}', space=vmem, size = 0x9000, scoped, tag = 'internal scratch']
  #allocation2 [shape = 'f32[2,4,256]{2,1,0:T(4,128)}', space=vmem, size = 0x2000, scoped, tag = 'scratch operand']
  #allocation3 [shape = 'f32[4,1]{1,0:T(4,128)}', space=vmem, size = 0x800, scoped, tag = 'scratch operand']
  #allocation4 [shape = 'f32[4,1]{1,0:T(4,128)}', space=vmem, size = 0x800, scoped, tag = 'scratch operand']
  #allocation5 [shape = 'f32[4,1]{1,0:T(4,128)}', space=vmem, size = 0x800, scoped, tag = 'scratch operand']
  #allocation6 [shape = 'f32[4,1]{1,0:T(4,128)}', space=vmem, size = 0x800, scoped, tag = 'scratch operand']
  %s0 = inlined_call_operand.vmem [shape: f32[2,4,256], index: 0, kind: input, shape index: {}]
  %s1 = inlined_call_operand.vmem [shape: f32[2,4,256], index: 1, kind: input, shape index: {}]
  %s2 = inlined_call_operand.vmem [shape: f32[4,4], index: 2, kind: input, shape index: {}]
  %s3 = inlined_call_operand.vmem [shape: f32[4,4], index: 3, kind: input, shape index: {}]
  %s4 = inlined_call_operand.vmem [shape: f32[4,1], index: 4, kind: input, shape index: {}]
  %s5 = inlined_call_operand.vmem [shape: f32[4,1], index: 5, kind: input, shape index: {}]
  %s6 = inlined_call_operand.vmem [shape: f32[4,1], index: 6, kind: input, shape index: {}]
  %s7 = inlined_call_operand.vmem [shape: f32[2,4,256], index: 7, kind: output, shape index: {}]
  %s8 = sld [smem:[#allocation0]]
  $region77: #{concat_forward.1} parent=0
    _
  %s10 = ssub.s32 1, %s8
  %s11 = scalar_select 0, %s10, %s8
  loop: start=0, step=1, limit=6
  $region2: #{concat_forward.1} parent=0 // loop_pre_header
    _
  $region3: #{concat_forward.1} parent=0 // loop_header
    %s13 = sphi 0, %s17
    %p14 = scmp.ge.s32.totalorder %s13, 6
    %s20 = sphi 0, %s39
    %s21 = sphi 0, %s35
    %s22 = sphi 0, %s31
    %s23 = sphi 0, %s20
    %s24 = sphi 0, %s21
    %s25 = sphi 0, %s22
    %s26 = sphi 0, %s23
    %s27 = sphi 0, %s24
    %s28 = sphi 0, %s25
    %s52 = sphi 0, %s54
    %s55 = sphi 0, %s52
    %s56 = sphi 0, %s55
    %s72 = sphi 0, %s56
    %s88 = sphi 0, %s90
    %s91 = sphi 0, %s88
    %s92 = sphi 0, %s91
    %s108 = sphi 0, %s92
    %s112 = sphi 0, %s112
    %s114 = sphi 0, %s112
    %s115 = sphi 0, %s114
    %s129 = sphi 0, %s115
    %s133 = sphi 0, %s133
    %s135 = sphi 0, %s133
    %s136 = sphi 0, %s135
    %s150 = sphi 0, %s136
    %s154 = sphi 0, %s154
    %s156 = sphi 0, %s154
    %s157 = sphi 0, %s156
    %s171 = sphi 0, %s157
    %s175 = sphi 0, %s175
    %s177 = sphi 0, %s175
    %s178 = sphi 0, %s177
    %s192 = sphi 0, %s178
    %s196 = sphi 0, %s196
    %s198 = sphi 0, %s196
    %s199 = sphi 0, %s198
    %s213 = sphi 0, %s199
    %s225 = sphi 0, %s227
    %s228 = sphi 0, %s225
    %s229 = sphi 0, %s228
    %s245 = sphi 0, %s229
  $region4: #{concat_forward.1} parent=0 // loop_header_branch
    %16 = sbr.rel (%p14) target = $region8
  $region5: #{concat_forward.1} parent=0 // loop_body
    %s18 = ssub.s32 %s13, 1
    %s19 = ssub.s32 %s13, 2
    %s29 = sadd.s32 1, %s22
    %p30 = scmp.ge.s32.totalorder %s29, 1
    %s31 = scalar_select %p30, 0, %s29
    %s32 = sadd.s32 1, %s21
    %s33 = scalar_select %p30, %s32, %s21
    %p34 = scmp.ge.s32.totalorder %s33, 2
    %s35 = scalar_select %p34, 0, %s33
    %s36 = sadd.s32 1, %s20
    %s37 = scalar_select %p34, %s36, %s20
    %p38 = scmp.ge.s32.totalorder %s37, 2
    %s39 = scalar_select %p38, 0, %s37
    %s40 = ssub.s32 1, %s20
    %s41 = smul.u32 %s40, %s21
    %s42 = sadd.s32 %s41, %s20
    %s43 = smul.u32 %s40, %s22
    %s44 = ssub.s32 1, %s39
    %s45 = smul.u32 %s44, %s35
    %s46 = sadd.s32 %s45, %s39
    %s47 = smul.u32 %s44, %s31
    %s48 = ssub.s32 %s42, %s46
    %s49 = ssub.s32 %s43, %s47
    %s50 = sor.u32 %s48, %s49
    %p51 = scmp.eq.s32.totalorder %s50, 0
    %s53 = sadd.s32 %s52, 1
    %s54 = scalar_select %p51, %s52, %s53
    %p57 = pneg %p51
    %p58 = scmp.eq.s32.totalorder %s13, 3
    %p59 = por %p57, %p58
    %p60 = scmp.ne.s32.totalorder %s52, %s55
    %p61 = scmp.eq.s32.totalorder %s13, 0
    %p62 = por %p60, %p61
    %p63 = scmp.ne.s32.totalorder %s52, %s55
    %p64 = scmp.eq.s32.totalorder %s18, 3
    %p65 = por %p63, %p64
    %p66 = scmp.ne.s32.totalorder %s55, %s56
    %p67 = scmp.eq.s32.totalorder %s18, 0
    %p68 = por %p66, %p67
    %p69 = scmp.ne.s32.totalorder %s55, %s56
    %p70 = scmp.eq.s32.totalorder %s19, 3
    %p71 = por %p69, %p70
    %p73 = scmp.ne.s32.totalorder %s56, %s72
    %p74 = scmp.eq.s32.totalorder %s19, 0
    %p75 = por %p73, %p74
    %s76 = ssub.s32 1, %s20
    %s77 = smul.u32 %s76, %s21
    %s78 = sadd.s32 %s77, %s20
    %s79 = smul.u32 %s76, %s22
    %s80 = ssub.s32 1, %s39
    %s81 = smul.u32 %s80, %s35
    %s82 = sadd.s32 %s81, %s39
    %s83 = smul.u32 %s80, %s31
    %s84 = ssub.s32 %s78, %s82
    %s85 = ssub.s32 %s79, %s83
    %s86 = sor.u32 %s84, %s85
    %p87 = scmp.eq.s32.totalorder %s86, 0
    %s89 = sadd.s32 %s88, 1
    %s90 = scalar_select %p87, %s88, %s89
    %p93 = pneg %p87
    %p94 = scmp.eq.s32.totalorder %s13, 3
    %p95 = por %p93, %p94
    %p96 = scmp.ne.s32.totalorder %s88, %s91
    %p97 = scmp.eq.s32.totalorder %s13, 0
    %p98 = por %p96, %p97
    %p99 = scmp.ne.s32.totalorder %s88, %s91
    %p100 = scmp.eq.s32.totalorder %s18, 3
    %p101 = por %p99, %p100
    %p102 = scmp.ne.s32.totalorder %s91, %s92
    %p103 = scmp.eq.s32.totalorder %s18, 0
    %p104 = por %p102, %p103
    %p105 = scmp.ne.s32.totalorder %s91, %s92
    %p106 = scmp.eq.s32.totalorder %s19, 3
    %p107 = por %p105, %p106
    %p109 = scmp.ne.s32.totalorder %s92, %s108
    %p110 = scmp.eq.s32.totalorder %s19, 0
    %p111 = por %p109, %p110
    %s113 = sadd.s32 %s112, 1
    %p116 = scmp.eq.s32.totalorder %s13, 3
    %p117 = scmp.ne.s32.totalorder %s112, %s114
    %p118 = scmp.eq.s32.totalorder %s13, 0
    %p119 = por %p117, %p118
    %p120 = scmp.ne.s32.totalorder %s112, %s114
    %p121 = scmp.eq.s32.totalorder %s18, 3
    %p122 = por %p120, %p121
    %p123 = scmp.ne.s32.totalorder %s114, %s115
    %p124 = scmp.eq.s32.totalorder %s18, 0
    %p125 = por %p123, %p124
    %p126 = scmp.ne.s32.totalorder %s114, %s115
    %p127 = scmp.eq.s32.totalorder %s19, 3
    %p128 = por %p126, %p127
    %p130 = scmp.ne.s32.totalorder %s115, %s129
    %p131 = scmp.eq.s32.totalorder %s19, 0
    %p132 = por %p130, %p131
    %s134 = sadd.s32 %s133, 1
    %p137 = scmp.eq.s32.totalorder %s13, 3
    %p138 = scmp.ne.s32.totalorder %s133, %s135
    %p139 = scmp.eq.s32.totalorder %s13, 0
    %p140 = por %p138, %p139
    %p141 = scmp.ne.s32.totalorder %s133, %s135
    %p142 = scmp.eq.s32.totalorder %s18, 3
    %p143 = por %p141, %p142
    %p144 = scmp.ne.s32.totalorder %s135, %s136
    %p145 = scmp.eq.s32.totalorder %s18, 0
    %p146 = por %p144, %p145
    %p147 = scmp.ne.s32.totalorder %s135, %s136
    %p148 = scmp.eq.s32.totalorder %s19, 3
    %p149 = por %p147, %p148
    %p151 = scmp.ne.s32.totalorder %s136, %s150
    %p152 = scmp.eq.s32.totalorder %s19, 0
    %p153 = por %p151, %p152
    %s155 = sadd.s32 %s154, 1
    %p158 = scmp.eq.s32.totalorder %s13, 3
    %p159 = scmp.ne.s32.totalorder %s154, %s156
    %p160 = scmp.eq.s32.totalorder %s13, 0
    %p161 = por %p159, %p160
    %p162 = scmp.ne.s32.totalorder %s154, %s156
    %p163 = scmp.eq.s32.totalorder %s18, 3
    %p164 = por %p162, %p163
    %p165 = scmp.ne.s32.totalorder %s156, %s157
    %p166 = scmp.eq.s32.totalorder %s18, 0
    %p167 = por %p165, %p166
    %p168 = scmp.ne.s32.totalorder %s156, %s157
    %p169 = scmp.eq.s32.totalorder %s19, 3
    %p170 = por %p168, %p169
    %p172 = scmp.ne.s32.totalorder %s157, %s171
    %p173 = scmp.eq.s32.totalorder %s19, 0
    %p174 = por %p172, %p173
    %s176 = sadd.s32 %s175, 1
    %p179 = scmp.eq.s32.totalorder %s13, 3
    %p180 = scmp.ne.s32.totalorder %s175, %s177
    %p181 = scmp.eq.s32.totalorder %s13, 0
    %p182 = por %p180, %p181
    %p183 = scmp.ne.s32.totalorder %s175, %s177
    %p184 = scmp.eq.s32.totalorder %s18, 3
    %p185 = por %p183, %p184
    %p186 = scmp.ne.s32.totalorder %s177, %s178
    %p187 = scmp.eq.s32.totalorder %s18, 0
    %p188 = por %p186, %p187
    %p189 = scmp.ne.s32.totalorder %s177, %s178
    %p190 = scmp.eq.s32.totalorder %s19, 3
    %p191 = por %p189, %p190
    %p193 = scmp.ne.s32.totalorder %s178, %s192
    %p194 = scmp.eq.s32.totalorder %s19, 0
    %p195 = por %p193, %p194
    %s197 = sadd.s32 %s196, 1
    %p200 = scmp.eq.s32.totalorder %s13, 3
    %p201 = scmp.ne.s32.totalorder %s196, %s198
    %p202 = scmp.eq.s32.totalorder %s13, 0
    %p203 = por %p201, %p202
    %p204 = scmp.ne.s32.totalorder %s196, %s198
    %p205 = scmp.eq.s32.totalorder %s18, 3
    %p206 = por %p204, %p205
    %p207 = scmp.ne.s32.totalorder %s198, %s199
    %p208 = scmp.eq.s32.totalorder %s18, 0
    %p209 = por %p207, %p208
    %p210 = scmp.ne.s32.totalorder %s198, %s199
    %p211 = scmp.eq.s32.totalorder %s19, 3
    %p212 = por %p210, %p211
    %p214 = scmp.ne.s32.totalorder %s199, %s213
    %p215 = scmp.eq.s32.totalorder %s19, 0
    %p216 = por %p214, %p215
    %s217 = smul.u32 %s20, %s21
    %s218 = smul.u32 %s20, %s22
    %s219 = smul.u32 %s39, %s35
    %s220 = smul.u32 %s39, %s31
    %s221 = ssub.s32 %s217, %s219
    %s222 = ssub.s32 %s218, %s220
    %s223 = sor.u32 %s221, %s222
    %p224 = scmp.eq.s32.totalorder %s223, 0
    %s226 = sadd.s32 %s225, 1
    %s227 = scalar_select %p224, %s225, %s226
    %p230 = pneg %p224
    %p231 = scmp.eq.s32.totalorder %s13, 3
    %p232 = por %p230, %p231
    %p233 = scmp.ne.s32.totalorder %s225, %s228
    %p234 = scmp.eq.s32.totalorder %s13, 0
    %p235 = por %p233, %p234
    %p236 = scmp.ne.s32.totalorder %s225, %s228
    %p237 = scmp.eq.s32.totalorder %s18, 3
    %p238 = por %p236, %p237
    %p239 = scmp.ne.s32.totalorder %s228, %s229
    %p240 = scmp.eq.s32.totalorder %s18, 0
    %p241 = por %p239, %p240
    %p242 = scmp.ne.s32.totalorder %s228, %s229
    %p243 = scmp.eq.s32.totalorder %s19, 3
    %p244 = por %p242, %p243
    %p246 = scmp.ne.s32.totalorder %s229, %s245
    %p247 = scmp.eq.s32.totalorder %s19, 0
    %p248 = por %p246, %p247
    %p249 = scmp.le.s32.totalorder 1, %s13
    %p250 = scmp.lt.s32.totalorder %s13, 5
    %p251 = pnand %p249, %p250
    %p252 = pneg %p251
    // Predicated region
    $region9: #{concat_forward.1} parent=5 // pred_check
      _
    $region10: #{concat_forward.1} parent=5 // pred_check_branch
      %254 = sbr.rel (%p251) target = $region12
    $region11: #{concat_forward.1} parent=5 // pred_region
      %s255 = ssub.s32 %s13, 1
      // Predicated region
      $region13: #{concat_forward.1} parent=11 // pred_check
        %p256 = pneg %p125
      $region14: #{concat_forward.1} parent=11 // pred_check_branch
        %258 = sbr.rel (%p256) target = $region16
      $region15: #{concat_forward.1} parent=11 // pred_region
        _
      $region16: #{concat_forward.1} parent=11 // pred_fallthru
        _
      // Predicated region
      $region17: #{concat_forward.1} parent=11 // pred_check
        %p259 = pneg %p146
      $region18: #{concat_forward.1} parent=11 // pred_check_branch
        %261 = sbr.rel (%p259) target = $region20
      $region19: #{concat_forward.1} parent=11 // pred_region
        _
      $region20: #{concat_forward.1} parent=11 // pred_fallthru
        _
      // Predicated region
      $region21: #{concat_forward.1} parent=11 // pred_check
        %p262 = pneg %p167
      $region22: #{concat_forward.1} parent=11 // pred_check_branch
        %264 = sbr.rel (%p262) target = $region24
      $region23: #{concat_forward.1} parent=11 // pred_region
        _
      $region24: #{concat_forward.1} parent=11 // pred_fallthru
        _
      // Predicated region
      $region25: #{concat_forward.1} parent=11 // pred_check
        %p265 = pneg %p188
      $region26: #{concat_forward.1} parent=11 // pred_check_branch
        %267 = sbr.rel (%p265) target = $region28
      $region27: #{concat_forward.1} parent=11 // pred_region
        _
      $region28: #{concat_forward.1} parent=11 // pred_fallthru
        _
      // Predicated region
      $region29: #{concat_forward.1} parent=11 // pred_check
        %p268 = pneg %p209
      $region30: #{concat_forward.1} parent=11 // pred_check_branch
        %270 = sbr.rel (%p268) target = $region32
      $region31: #{concat_forward.1} parent=11 // pred_region
        _
      $region32: #{concat_forward.1} parent=11 // pred_fallthru
        _
    $region12: #{concat_forward.1} parent=5 // pred_fallthru
      _
    %p271 = scmp.lt.s32.totalorder %s13, 4
    // Predicated region
    $region33: #{concat_forward.1} parent=5 // pred_check
      %p272 = pneg %p271
    $region34: #{concat_forward.1} parent=5 // pred_check_branch
      %274 = sbr.rel (%p272) target = $region36
    $region35: #{concat_forward.1} parent=5 // pred_region
      // Predicated region
      $region37: #{concat_forward.1} parent=35 // pred_check
        %p275 = pneg %p62
      $region38: #{concat_forward.1} parent=35 // pred_check_branch
        %277 = sbr.rel (%p275) target = $region40
      $region39: #{concat_forward.1} parent=35 // pred_region
        %s278 = ssub.s32 1, %s20
        %s279 = smul.u32 %s278, %s21
        %s280 = sadd.s32 %s279, %s20
        %s281 = smul.u32 %s278, %s22
        %s282 = smul.u32 2, %s281
        %p283 = scmp.lt.s32.totalorder %s280, 1
        %s284 = scalar_select %p283, %s280, 1
        %p285 = scmp.lt.s32.totalorder %s282, 1
        %s286 = scalar_select %p285, %s282, 1
        %s287 = smul.addr %s284, 2
        %s288 = sadd.s32 %s286, %s287
        %s289 = smul.addr %s288, 4
        %s290 = scalar_lea.vmem %s0, %s289
        %s291 = ssub.s32 1, %s20
        %s292 = smul.u32 %s291, %s21
        %s293 = sadd.s32 %s292, %s20
        %s294 = smul.u32 %s291, %s22
        %s295 = smul.u32 2, %s294
      $region40: #{concat_forward.1} parent=35 // pred_fallthru
        _
      // Predicated region
      $region41: #{concat_forward.1} parent=35 // pred_check
        %p296 = pneg %p98
      $region42: #{concat_forward.1} parent=35 // pred_check_branch
        %298 = sbr.rel (%p296) target = $region44
      $region43: #{concat_forward.1} parent=35 // pred_region
        %s299 = ssub.s32 1, %s20
        %s300 = smul.u32 %s299, %s21
        %s301 = sadd.s32 %s300, %s20
        %s302 = smul.u32 %s299, %s22
        %s303 = smul.u32 2, %s302
        %p304 = scmp.lt.s32.totalorder %s301, 1
        %s305 = scalar_select %p304, %s301, 1
        %p306 = scmp.lt.s32.totalorder %s303, 1
        %s307 = scalar_select %p306, %s303, 1
        %s308 = smul.addr %s305, 2
        %s309 = sadd.s32 %s307, %s308
        %s310 = smul.addr %s309, 4
        %s311 = scalar_lea.vmem %s1, %s310
        %s312 = ssub.s32 1, %s20
        %s313 = smul.u32 %s312, %s21
        %s314 = sadd.s32 %s313, %s20
        %s315 = smul.u32 %s312, %s22
        %s316 = smul.u32 2, %s315
      $region44: #{concat_forward.1} parent=35 // pred_fallthru
        _
    $region36: #{concat_forward.1} parent=5 // pred_fallthru
      _
    %p317 = scmp.le.s32.totalorder 1, %s13
    %p318 = scmp.lt.s32.totalorder %s13, 5
    %p319 = pnand %p317, %p318
    %p320 = pneg %p319
    // Predicated region
    $region45: #{concat_forward.1} parent=5 // pred_check
      _
    $region46: #{concat_forward.1} parent=5 // pred_check_branch
      %322 = sbr.rel (%p319) target = $region48
    $region47: #{concat_forward.1} parent=5 // pred_region
      %s323 = ssub.s32 %s13, 1
      %s324 = ssub.s32 1, %s23
      %s325 = smul.u32 %s324, %s24
      %s326 = sadd.s32 %s325, %s23
      %s327 = smul.u32 %s324, %s25
      %s328 = smul.u32 2, %s327
      %p329 = scmp.lt.s32.totalorder %s326, 1
      %s330 = scalar_select %p329, %s326, 1
      %p331 = scmp.lt.s32.totalorder %s328, 1
      %s332 = scalar_select %p331, %s328, 1
      %s333 = smul.addr %s330, 2
      %s334 = sadd.s32 %s332, %s333
      %s335 = smul.addr %s334, 4
      %s336 = scalar_lea.vmem %s0, %s335
      %p337 = pneg %p68
      %p338 = pneg %p65
      %s339 = ssub.s32 1, %s23
      %s340 = smul.u32 %s339, %s24
      %s341 = sadd.s32 %s340, %s23
      %s342 = smul.u32 %s339, %s25
      %s343 = smul.u32 2, %s342
      %p344 = scmp.lt.s32.totalorder %s341, 1
      %s345 = scalar_select %p344, %s341, 1
      %p346 = scmp.lt.s32.totalorder %s343, 1
      %s347 = scalar_select %p346, %s343, 1
      %s348 = smul.addr %s345, 2
      %s349 = sadd.s32 %s347, %s348
      %s350 = smul.addr %s349, 4
      %s351 = scalar_lea.vmem %s1, %s350
      %p352 = pneg %p104
      %p353 = pneg %p101
      %p354 = pneg %p125
      %p355 = pneg %p122
      %p356 = pneg %p146
      %p357 = pneg %p143
      %p358 = pneg %p167
      %p359 = pneg %p164
      %p360 = pneg %p188
      %p361 = pneg %p185
      %p362 = pneg %p209
      %p363 = pneg %p206
      %p364 = pneg %p241
      %p365 = pneg %p238
      %s366 = smul.u32 %s23, %s24
      %s367 = smul.u32 %s23, %s25
      %s368 = smul.u32 2, %s367
      %p369 = scmp.lt.s32.totalorder %s366, 1
      %s370 = scalar_select %p369, %s366, 1
      %p371 = scmp.lt.s32.totalorder %s368, 1
      %s372 = scalar_select %p371, %s368, 1
      %s373 = smul.addr %s370, 2
      %s374 = sadd.s32 %s372, %s373
      %s375 = smul.addr %s374, 4
      %s376 = scalar_lea.vmem %s7, %s375
      %s377 = ssub.s32 1, %s23
      %s378 = smul.u32 %s377, %s24
      %s379 = sadd.s32 %s378, %s23
      %s380 = smul.u32 %s377, %s25
      %s381 = smul.u32 2, %s380
      %p382 = scmp.lt.s32.totalorder %s379, 1
      %s383 = scalar_select %p382, %s379, 1
      %p384 = scmp.lt.s32.totalorder %s381, 1
      %s385 = scalar_select %p384, %s381, 1
      %s386 = smul.addr %s383, 2
      %s387 = sadd.s32 %s385, %s386
      %s388 = smul.addr %s387, 4
      %s389 = scalar_lea.vmem %s0, %s388
      %s390 = ssub.s32 1, %s23
      %s391 = smul.u32 %s390, %s24
      %s392 = sadd.s32 %s391, %s23
      %s393 = smul.u32 %s390, %s25
      %s394 = smul.u32 2, %s393
      %s395 = ssub.s32 1, %s23
      %s396 = smul.u32 %s395, %s24
      %s397 = sadd.s32 %s396, %s23
      %s398 = smul.u32 %s395, %s25
      %s399 = smul.u32 2, %s398
      %p400 = scmp.lt.s32.totalorder %s397, 1
      %s401 = scalar_select %p400, %s397, 1
      %p402 = scmp.lt.s32.totalorder %s399, 1
      %s403 = scalar_select %p402, %s399, 1
      %s404 = smul.addr %s401, 2
      %s405 = sadd.s32 %s403, %s404
      %s406 = smul.addr %s405, 4
      %s407 = scalar_lea.vmem %s1, %s406
      %s408 = ssub.s32 1, %s23
      %s409 = smul.u32 %s408, %s24
      %s410 = sadd.s32 %s409, %s23
      %s411 = smul.u32 %s408, %s25
      %s412 = smul.u32 2, %s411
      %s413 = smul.u32 %s23, %s24
      %s414 = smul.u32 %s23, %s25
      %s415 = smul.u32 2, %s414
      %p416 = scmp.lt.s32.totalorder %s413, 1
      %s417 = scalar_select %p416, %s413, 1
      %p418 = scmp.lt.s32.totalorder %s415, 1
      %s419 = scalar_select %p418, %s415, 1
      %s420 = smul.addr %s417, 2
      %s421 = sadd.s32 %s419, %s420
      %s422 = smul.addr %s421, 4
      %s423 = scalar_lea.vmem %s7, %s422
      %s424 = smul.u32 %s23, %s24
      %s425 = smul.u32 %s23, %s25
      %s426 = smul.u32 2, %s425
      %s427 = sadd.s32 %s24, %s25
      %p428 = scmp.eq.s32.totalorder %s23, 0
      // Predicated region
      $region49: #{concat_forward.1} parent=47 // pred_check
        %p429 = pneg %p428
      $region50: #{concat_forward.1} parent=47 // pred_check_branch
        %431 = sbr.rel (%p429) target = $region52
      $region51: #{concat_forward.1} parent=47 // pred_region
        %p432 = scmp.eq.s32.totalorder %s24, 0
        %p433 = scmp.eq.s32.totalorder %s25, 0
        %p434 = pnand %p432, %p433
        %p435 = pneg %p434
        // Predicated region
        $region53: #{concat_forward.1} parent=51 // pred_check
          _
        $region54: #{concat_forward.1} parent=51 // pred_check_branch
          %437 = sbr.rel (%p434) target = $region56
        $region55: #{concat_forward.1} parent=51 // pred_region
          %vm438 = vcmask 3072
          %439 = vst.msk [vmem:[#allocation3] sm:$0xf] %vm438, 0.0
          %440 = vst.msk [vmem:[#allocation4] sm:$0xf] %vm438, 0.0
        $region56: #{concat_forward.1} parent=51 // pred_fallthru
          _
        %v441 = vld [vmem:[%s2] sm:$0xf]
        %v442 = vld [vmem:[%s389] sm:$0xff]
        %v443 = vld [vmem:[%s3] sm:$0xf]
        %v444 = vld [vmem:[%s407] sm:$0xff]
        %446 = vst [vmem:[#allocation1] ss:$2 sm:$0xff] %v444
        %v447 = vld.sshfl [vmem:[#allocation1] sm:$0xff pattern:$0x75316420]
        %v448 = vld.sshfl [vmem:[#allocation1 + $0x8] sm:$0xff pattern:$0x75316420]
        %vm449 = vcmask 31744
        %v451 = vsel %vm449, %v443, 0
        %vm453 = vcmask 1043456
        %v454 = vsel %vm453, %v447, 0
        %v456 = vsel %vm453, %v448, 0
        %458 = vmatpush.msra.mxu0 0.0
        %459 = vmatpush.msra.mxu0 0.0
        %460 = vmatpush.msra.mxu0 0.0
        %461 = vmatpush.msra.mxu0 0.0
        %462 = vmatpush.msra.mxu0 0.0
        %463 = vmatpush.msra.mxu0 0.0
        %464 = vmatpush.msra.mxu0 0.0
        %465 = vmatpush.msra.mxu0 0.0
        %466 = vmatpush.msra.mxu0 0.0
        %467 = vmatpush.msra.mxu0 0.0
        %468 = vmatpush.msra.mxu0 0.0
        %469 = vmatpush.msra.mxu0 0.0
        %470 = vmatpush.msra.mxu0 0.0
        %471 = vmatpush.msra.mxu0 0.0
        %472 = vmatpush.msra.mxu0 0.0
        %473 = vmatpush.msra.mxu0 %v454
        %474 = vmatmul.f32.gmra.mxu0 %v451
        %v475 = vpop.f32.mrf.mxu0
        %v476 = vadd.f32 0.0, %v475
        %477 = vdwg.mxu0
        %478 = vmatpush.msra.mxu0 0.0
        %479 = vmatpush.msra.mxu0 0.0
        %480 = vmatpush.msra.mxu0 0.0
        %481 = vmatpush.msra.mxu0 0.0
        %482 = vmatpush.msra.mxu0 0.0
        %483 = vmatpush.msra.mxu0 0.0
        %484 = vmatpush.msra.mxu0 0.0
        %485 = vmatpush.msra.mxu0 0.0
        %486 = vmatpush.msra.mxu0 0.0
        %487 = vmatpush.msra.mxu0 0.0
        %488 = vmatpush.msra.mxu0 0.0
        %489 = vmatpush.msra.mxu0 0.0
        %490 = vmatpush.msra.mxu0 0.0
        %491 = vmatpush.msra.mxu0 0.0
        %492 = vmatpush.msra.mxu0 0.0
        %493 = vmatpush.msra.mxu0 %v456
        %494 = vmatmul.f32.gmra.mxu0 %v451
        %v495 = vpop.f32.mrf.mxu0
        %v496 = vadd.f32 0.0, %v495
        %497 = vdwg.mxu0
        %499 = vst [vmem:[#allocation1] ss:$2 sm:$0xff] %v442
        %v500 = vld.sshfl [vmem:[#allocation1] sm:$0xff pattern:$0x75316420]
        %v501 = vld.sshfl [vmem:[#allocation1 + $0x8] sm:$0xff pattern:$0x75316420]
        %v503 = vsel %vm449, %v441, 0
        %v505 = vsel %vm453, %v500, 0
        %v507 = vsel %vm453, %v501, 0
        %509 = vmatpush.msra.mxu0 0.0
        %510 = vmatpush.msra.mxu0 0.0
        %511 = vmatpush.msra.mxu0 0.0
        %512 = vmatpush.msra.mxu0 0.0
        %513 = vmatpush.msra.mxu0 0.0
        %514 = vmatpush.msra.mxu0 0.0
        %515 = vmatpush.msra.mxu0 0.0
        %516 = vmatpush.msra.mxu0 0.0
        %517 = vmatpush.msra.mxu0 0.0
        %518 = vmatpush.msra.mxu0 0.0
        %519 = vmatpush.msra.mxu0 0.0
        %520 = vmatpush.msra.mxu0 0.0
        %521 = vmatpush.msra.mxu0 0.0
        %522 = vmatpush.msra.mxu0 0.0
        %523 = vmatpush.msra.mxu0 0.0
        %524 = vmatpush.msra.mxu0 %v505
        %525 = vmatmul.f32.gmra.mxu0 %v503
        %v526 = vpop.f32.mrf.mxu0
        %v527 = vadd.f32 %v476, %v526
        %528 = vdwg.mxu0
        %529 = vmatpush.msra.mxu0 0.0
        %530 = vmatpush.msra.mxu0 0.0
        %531 = vmatpush.msra.mxu0 0.0
        %532 = vmatpush.msra.mxu0 0.0
        %533 = vmatpush.msra.mxu0 0.0
        %534 = vmatpush.msra.mxu0 0.0
        %535 = vmatpush.msra.mxu0 0.0
        %536 = vmatpush.msra.mxu0 0.0
        %537 = vmatpush.msra.mxu0 0.0
        %538 = vmatpush.msra.mxu0 0.0
        %539 = vmatpush.msra.mxu0 0.0
        %540 = vmatpush.msra.mxu0 0.0
        %541 = vmatpush.msra.mxu0 0.0
        %542 = vmatpush.msra.mxu0 0.0
        %543 = vmatpush.msra.mxu0 0.0
        %544 = vmatpush.msra.mxu0 %v507
        %545 = vmatmul.f32.gmra.mxu0 %v503
        %v546 = vpop.f32.mrf.mxu0
        %v547 = vadd.f32 %v496, %v546
        %548 = vdwg.mxu0
        %v549 = vld [vmem:[%s4] sm:$0xf]
        %551 = vset.pattern.permute.xlu0 0
        %552 = vperm.xlu0 %551, %v549
        %v553 = vpop.permute.xlu0 %552
        %v555 = vadd.f32 %v527, %v553
        %v556 = vadd.f32 %v547, %v553
        %v557 = vmul.f32 %v555, 0.5
        %v558 = vmul.f32 %v556, 0.5
        %v559 = vmul.f32 %v555, 0.70710677
        %v560 = vmul.f32 %v556, 0.70710677
        %v561 = vmul.f32 %v559, %v559
        %v562 = vmin.f32 16.0, %v561
        %v563 = vmul.f32 %v562, 2.1237322e-06
        %v564 = vadd.f32 %v563, 0.00028619796
        %v565 = vmul.f32 %v562, %v564
        %v566 = vadd.f32 %v565, 0.0036580483
        %v567 = vmul.f32 %v562, %v566
        %v568 = vadd.f32 %v567, 0.05243302
        %v569 = vmul.f32 %v562, %v568
        %v570 = vadd.f32 %v569, 0.18741608
        %v571 = vmul.f32 %v562, %v570
        %v572 = vadd.f32 %v571, 1.1283791
        %v573 = vmul.f32 %v559, %v572
        %v574 = vmul.f32 %v562, 3.8918573e-05
        %v575 = vadd.f32 %v574, 0.001143296
        %v576 = vmul.f32 %v562, %v575
        %v577 = vadd.f32 %v576, 0.014752088
        %v578 = vmul.f32 %v562, %v577
        %v579 = vadd.f32 %v578, 0.112945676
        %v580 = vmul.f32 %v562, %v579
        %v581 = vadd.f32 %v580, 0.4994258
        %v582 = vmul.f32 %v562, %v581
        %v583 = vadd.f32 %v582, 1.0
        %v584 = vrcp.pop %v583
        %v585 = vmul.f32 %v583, %v584
        %v586 = vsub.f32 1.0, %v585
        %v587 = vmul.f32 %v584, %v586
        %v588 = vadd.f32 %v584, %v587
        %vm589 = vweird.f32 %v583
        %vm590 = vweird.f32 %v584
        %vm591 = vmor %vm589, %vm590
        %v592 = vsel %vm591, %v584, %v588
        %v593 = vand.u32 2147483647, %v583
        %vm594 = vcmp.eq.f32.partialorder %v593, 8.507059e+37
        %v595 = vand.u32 %v583, 2147483648
        %v596 = vor.u32 1.1754944e-38, %v595
        %v597 = vsel %vm594, %v596, %v592
        %v598 = vmul.f32 %v573, %v597
        %v599 = vmin.f32 %v598, 1.0
        %v600 = vmax.f32 %v599, -1.0
        %v601 = vmul.f32 %v560, %v560
        %v602 = vmin.f32 16.0, %v601
        %v603 = vmul.f32 %v602, 2.1237322e-06
        %v604 = vadd.f32 %v603, 0.00028619796
        %v605 = vmul.f32 %v602, %v604
        %v606 = vadd.f32 %v605, 0.0036580483
        %v607 = vmul.f32 %v602, %v606
        %v608 = vadd.f32 %v607, 0.05243302
        %v609 = vmul.f32 %v602, %v608
        %v610 = vadd.f32 %v609, 0.18741608
        %v611 = vmul.f32 %v602, %v610
        %v612 = vadd.f32 %v611, 1.1283791
        %v613 = vmul.f32 %v560, %v612
        %v614 = vmul.f32 %v602, 3.8918573e-05
        %v615 = vadd.f32 %v614, 0.001143296
        %v616 = vmul.f32 %v602, %v615
        %v617 = vadd.f32 %v616, 0.014752088
        %v618 = vmul.f32 %v602, %v617
        %v619 = vadd.f32 %v618, 0.112945676
        %v620 = vmul.f32 %v602, %v619
        %v621 = vadd.f32 %v620, 0.4994258
        %v622 = vmul.f32 %v602, %v621
        %v623 = vadd.f32 %v622, 1.0
        %v624 = vrcp.pop %v623
        %v625 = vmul.f32 %v623, %v624
        %v626 = vsub.f32 1.0, %v625
        %v627 = vmul.f32 %v624, %v626
        %v628 = vadd.f32 %v624, %v627
        %vm629 = vweird.f32 %v623
        %vm630 = vweird.f32 %v624
        %vm631 = vmor %vm629, %vm630
        %v632 = vsel %vm631, %v624, %v628
        %v633 = vand.u32 2147483647, %v623
        %vm634 = vcmp.eq.f32.partialorder %v633, 8.507059e+37
        %v635 = vand.u32 %v623, 2147483648
        %v636 = vor.u32 1.1754944e-38, %v635
        %v637 = vsel %vm634, %v636, %v632
        %v638 = vmul.f32 %v613, %v637
        %v639 = vmin.f32 %v638, 1.0
        %v640 = vmax.f32 %v639, -1.0
        %v641 = vadd.f32 %v600, 1.0
        %v642 = vadd.f32 %v640, 1.0
        %v643 = vmul.f32 %v557, %v641
        %v644 = vmul.f32 %v558, %v642
        %v647 = vrot.slane %v644, 4
        %v648 = vsel %vm453, %v643, %v647
        %s650 = smul.u32 %s427, 2
        %s651 = smul.addr %s650, 4
        %s652 = scalar_lea.vmem [#allocation2], %s651
        %653 = vst [vmem:[%s652] sm:$0xff] %v648
        %v654 = vld [vmem:[#allocation3] sm:$0xf]
        %v655 = vsel %vm453, %v643, 0.0
        %v656 = vsel %vm453, %v644, 0.0
        %v657 = vadd.f32 %v655, %v656
        %658 = vadd.xlane.f32.xlu0 %v657
        %v659 = vpop.xlane.xlu0 %658
        %v660 = vadd.f32 %v654, %v659
        %vm661 = vcmask 3072
        %662 = vst.msk [vmem:[#allocation3] sm:$0xf] %vm661, %v660
        %v663 = vld [vmem:[#allocation4] sm:$0xf]
        %v664 = vmul.f32 %v643, %v643
        %v665 = vmul.f32 %v644, %v644
        %v666 = vsel %vm453, %v664, 0.0
        %v667 = vsel %vm453, %v665, 0.0
        %v668 = vadd.f32 %v666, %v667
        %669 = vadd.xlane.f32.xlu0 %v668
        %v670 = vpop.xlane.xlu0 %669
        %v671 = vadd.f32 %v663, %v670
        %672 = vst.msk [vmem:[#allocation4] sm:$0xf] %vm661, %v671
        %p673 = scmp.eq.s32.totalorder %s24, 1
        %p674 = pnand %p673, %p433
        %p675 = pneg %p674
        // Predicated region
        $region57: #{concat_forward.1} parent=51 // pred_check
          _
        $region58: #{concat_forward.1} parent=51 // pred_check_branch
          %677 = sbr.rel (%p674) target = $region60
        $region59: #{concat_forward.1} parent=51 // pred_region
          %v678 = vld [vmem:[#allocation3] sm:$0xf]
          %v679 = vmul.f32 %v678, 0.001953125
          %v680 = vld [vmem:[#allocation4] sm:$0xf]
          %v681 = vmul.f32 %v680, 0.001953125
          %v682 = vmul.f32 %v679, %v679
          %v683 = vsub.f32 %v681, %v682
          %v684 = vmax.f32 %v683, 0.0
          %v685 = vadd.f32 %v684, 1e-05
          %v686 = vrsqrt.pop %v685
          %v687 = vmul.f32 %v686, %v685
          %v688 = vmul.f32 %v687, %v686
          %v689 = vmul.f32 0.5, %v688
          %v690 = vsub.f32 1.5, %v689
          %v691 = vmul.f32 %v686, %v690
          %vm692 = vweird.f32 %v685
          %vm693 = vweird.f32 %v686
          %vm694 = vmor %vm692, %vm693
          %v695 = vsel %vm694, %v686, %v691
          %v696 = vld [vmem:[%s5] sm:$0xf]
          %v697 = vmul.f32 %v696, %v695
          %698 = vst.msk [vmem:[#allocation5] sm:$0xf] %vm661, %v697
          %v699 = vld [vmem:[%s6] sm:$0xf]
          %v700 = vmul.f32 %v679, %v697
          %v701 = vsub.f32 %v699, %v700
          %702 = vst.msk [vmem:[#allocation6] sm:$0xf] %vm661, %v701
        $region60: #{concat_forward.1} parent=51 // pred_fallthru
          _
      $region52: #{concat_forward.1} parent=47 // pred_fallthru
        _
      %p703 = scmp.eq.s32.totalorder %s23, 1
      // Predicated region
      $region61: #{concat_forward.1} parent=47 // pred_check
        %p704 = pneg %p703
      $region62: #{concat_forward.1} parent=47 // pred_check_branch
        %706 = sbr.rel (%p704) target = $region64
      $region63: #{concat_forward.1} parent=47 // pred_region
        %s707 = smul.u32 %s427, 2
        %s708 = smul.addr %s707, 4
        %s709 = scalar_lea.vmem [#allocation2], %s708
        %v710 = vld [vmem:[%s709] sm:$0xff]
        %v711 = vld [vmem:[#allocation5] sm:$0xf]
        %713 = vset.pattern.permute.xlu0 0
        %714 = vperm.xlu0 %713, %v711
        %v715 = vpop.permute.xlu0 %714
        %v717 = vunpack.c.l.s4 839922192
        %v718 = vunpack.c.0.s8 %v717
        %v719 = vperm.slane %v715, %v718
        %v721 = vmul.f32 %v710, %v719
        %v722 = vld [vmem:[#allocation6] sm:$0xf]
        %724 = vset.pattern.permute.xlu0 0
        %725 = vperm.xlu0 %724, %v722
        %v726 = vpop.permute.xlu0 %725
        %v728 = vunpack.c.l.s4 839922192
        %v729 = vunpack.c.0.s8 %v728
        %v730 = vperm.slane %v726, %v729
        %v732 = vadd.f32 %v721, %v730
        %733 = vst [vmem:[%s423] sm:$0xff] %v732
      $region64: #{concat_forward.1} parent=47 // pred_fallthru
        _
      %s734 = smul.u32 %s23, %s24
      %s735 = smul.u32 %s23, %s25
      %s736 = smul.u32 2, %s735
      %p737 = scmp.lt.s32.totalorder %s734, 1
      %s738 = scalar_select %p737, %s734, 1
      %p739 = scmp.lt.s32.totalorder %s736, 1
      %s740 = scalar_select %p739, %s736, 1
      %s741 = smul.addr %s738, 2
      %s742 = sadd.s32 %s740, %s741
      %s743 = smul.addr %s742, 4
      %s744 = scalar_lea.vmem %s7, %s743
      // Predicated region
      $region65: #{concat_forward.1} parent=47 // pred_check
        %p745 = pneg %p238
      $region66: #{concat_forward.1} parent=47 // pred_check_branch
        %747 = sbr.rel (%p745) target = $region68
      $region67: #{concat_forward.1} parent=47 // pred_region
        %s748 = smul.u32 %s23, %s24
        %s749 = smul.u32 %s23, %s25
        %s750 = smul.u32 2, %s749
      $region68: #{concat_forward.1} parent=47 // pred_fallthru
        _
    $region48: #{concat_forward.1} parent=5 // pred_fallthru
      _
    %p751 = scmp.le.s32.totalorder 2, %s13
    // Predicated region
    $region69: #{concat_forward.1} parent=5 // pred_check
      %p752 = pneg %p751
    $region70: #{concat_forward.1} parent=5 // pred_check_branch
      %754 = sbr.rel (%p752) target = $region72
    $region71: #{concat_forward.1} parent=5 // pred_region
      %s755 = ssub.s32 %s13, 2
      // Predicated region
      $region73: #{concat_forward.1} parent=71 // pred_check
        %p756 = pneg %p244
      $region74: #{concat_forward.1} parent=71 // pred_check_branch
        %758 = sbr.rel (%p756) target = $region76
      $region75: #{concat_forward.1} parent=71 // pred_region
        %s759 = smul.u32 %s26, %s27
        %s760 = smul.u32 %s26, %s28
        %s761 = smul.u32 2, %s760
        %p762 = scmp.lt.s32.totalorder %s759, 1
        %s763 = scalar_select %p762, %s759, 1
        %p764 = scmp.lt.s32.totalorder %s761, 1
        %s765 = scalar_select %p764, %s761, 1
        %s766 = smul.addr %s763, 2
        %s767 = sadd.s32 %s765, %s766
        %s768 = smul.addr %s767, 4
        %s769 = scalar_lea.vmem %s7, %s768
      $region76: #{concat_forward.1} parent=71 // pred_fallthru
        _
    $region72: #{concat_forward.1} parent=5 // pred_fallthru
      _
  $region6: #{concat_forward.1} parent=0 // loop_footer
    %s17 = sadd.s32 1, %s13
  $region7: #{concat_forward.1} parent=0 // loop_footer_branch
    %12 = sbr.rel target = $region3
  $region8: #{concat_forward.1} parent=0 // loop_exit
    _

</llo_original>
